<compile_context>
chip_gen: v7x
topology: tpu7x:2x2x1
jax: 0.10.0
libtpu: 0.0.40
codegen_flags: <defaults>
</compile_context>

<pallas_src>
import functools

import jax
import jax.numpy as jnp
from jax import lax
from jax.experimental import pallas as pl
from jax.experimental.pallas import tpu as pltpu

IMG_DIM = 784           # flattened image features
HIDDEN = 128            # width of the first Linear


def _round_up(n, m):
    return ((n + m - 1) // m) * m


def _has_two_tensorcores():
    # v7x has 2 TensorCores per chip; v5e/v6e have 1.
    try:
        return "v7" in jax.devices()[0].device_kind.lower()
    except Exception:
        return False


_TWO_CORES = _has_two_tensorcores()


def discriminator_kernel(x_ref, w1_ref, b1_ref, w2_ref, b2_ref, o_ref):
    # x_ref:  (tile, 784)  f32   batch tile, read straight from HBM
    # w1_ref: (784, 128)   bf16  first-layer weight, resident across grid steps
    # b1_ref: (1, 128)     f32
    # w2_ref: (1, 128)     bf16  second-layer weight as a row
    # b2_ref: (1, 1)       f32   scalar bias, lives in SMEM
    # o_ref:  (1, tile)    f32   lane-dense output row

    # Cast the f32 tile to bf16 on the VPU, then Linear(784 -> 128) on the MXU
    # with f32 accumulation.  K = 784 (full extent); Mosaic handles the
    # 6*128 + 16 lane remainder.
    x_bf = x_ref[...].astype(jnp.bfloat16)
    h = jnp.dot(x_bf, w1_ref[...], preferred_element_type=jnp.float32)
    h = h + b1_ref[...]

    # LeakyReLU(negative_slope=0.1) on the VPU.
    h = jnp.where(h > 0, h, 0.1 * h)

    # Linear(128 -> 1), emitted directly as a lane-dense (1, tile) row:
    # contract the hidden axis of both bf16 operands (A @ B^T form on the MXU).
    z = lax.dot_general(
        w2_ref[...], h.astype(jnp.bfloat16),
        dimension_numbers=(((1,), (1,)), ((), ())),
        preferred_element_type=jnp.float32,
    )
    z = z + b2_ref[0, 0]

    # Sigmoid: exp + approximate reciprocal, both served by the EUP slot.
    o_ref[...] = pl.reciprocal(1.0 + jnp.exp(-z), approx=True)


def _pick_tiling(batch, bm):
    """Batch tile / grid-size selection (all static Python ints)."""
    tile_default = max(128, _round_up(bm, 128))
    if batch > tile_default:
        tile = tile_default                       # multi-block, 128-multiple tiles
    elif _TWO_CORES and batch >= 256:
        # v7x megacore: two balanced 128-multiple blocks so both TCs get work.
        tile = _round_up(pl.cdiv(batch, 2), 128)
    else:
        tile = batch                              # single full-extent block, no padding
    n_blocks = pl.cdiv(batch, tile)
    return tile, n_blocks


@functools.partial(jax.jit, static_argnames=("bm",))
def discriminator_forward(x, w1, b1, w2, b2, *, bm=1024):
    B, D = x.shape
    assert D == IMG_DIM

    tile, n_blocks = _pick_tiling(B, bm)
    out_lanes = n_blocks * tile      # output buffer is tiny; extra lanes sliced off

    # Only the small operands are converted in the wrapper; x ships as-is (f32).
    w1_bf = w1.astype(jnp.bfloat16)                       # (784, 128), ~200 KB
    b1_r = b1.reshape(1, HIDDEN).astype(jnp.float32)
    w2_r = w2.reshape(1, HIDDEN).astype(jnp.bfloat16)
    b2_r = b2.reshape(1, 1).astype(jnp.float32)

    out_row = pl.pallas_call(
        discriminator_kernel,
        out_shape=jax.ShapeDtypeStruct((1, out_lanes), jnp.float32),
        grid_spec=pltpu.PrefetchScalarGridSpec(
            num_scalar_prefetch=0,
            grid=(n_blocks,),
            in_specs=[
                pl.BlockSpec((tile, IMG_DIM), lambda i: (i, 0)),      # x tile (edge blocks ok)
                pl.BlockSpec((IMG_DIM, HIDDEN), lambda i: (0, 0)),    # W1 (resident)
                pl.BlockSpec((1, HIDDEN), lambda i: (0, 0)),          # b1
                pl.BlockSpec((1, HIDDEN), lambda i: (0, 0)),          # W2 row
                pl.BlockSpec(memory_space=pltpu.MemorySpace.SMEM),    # b2 scalar
            ],
            out_specs=pl.BlockSpec((1, tile), lambda i: (0, i)),      # lane-dense
        ),
        compiler_params=pltpu.CompilerParams(
            dimension_semantics=("parallel",),
        ),
    )(x, w1_bf, b1_r, w2_r, b2_r)

    return out_row.reshape(-1)[:B].reshape(B, 1)


def init_params(key):
    """Deterministic init mimicking PyTorch nn.Linear default:
    U(-1/sqrt(fan_in), 1/sqrt(fan_in)) for weights and biases."""
    k1, k2, k3, k4 = jax.random.split(key, 4)
    bound1 = 1.0 / jnp.sqrt(float(IMG_DIM))
    bound2 = 1.0 / jnp.sqrt(float(HIDDEN))
    w1 = jax.random.uniform(k1, (IMG_DIM, HIDDEN), jnp.float32, -bound1, bound1)
    b1 = jax.random.uniform(k2, (HIDDEN,), jnp.float32, -bound1, bound1)
    w2 = jax.random.uniform(k3, (HIDDEN,), jnp.float32, -bound2, bound2)
    b2 = jax.random.uniform(k4, (1,), jnp.float32, -bound2, bound2)
    return w1, b1, w2, b2


def reference_forward(x, w1, b1, w2, b2):
    h = x @ w1 + b1.reshape(1, HIDDEN)
    h = jnp.where(h > 0, h, 0.1 * h)
    z = h @ w2.reshape(HIDDEN, 1) + b2.reshape(1, 1)
    return jax.nn.sigmoid(z)


if __name__ == "__main__":
    key = jax.random.PRNGKey(0)
    kx, kp = jax.random.split(key)
    w1, b1, w2, b2 = init_params(kp)

    # Multi-block path with a partial edge block: B=300, bm=128 -> grid of 3,
    # last block only 44 valid rows (exercises unpadded cdiv-grid edge blocks,
    # in-kernel bf16 cast, SMEM scalar, lane-dense multi-block output).
    B = 300
    x = jax.random.normal(kx, (B, IMG_DIM), jnp.float32)
    out = jax.block_until_ready(discriminator_forward(x, w1, b1, w2, b2, bm=128))
    ref = reference_forward(x, w1, b1, w2, b2)
    assert out.shape == (B, 1)
    assert jnp.max(jnp.abs(out - ref)) < 2e-2, "mismatch vs reference (multi-block)"

    # Odd small batch: single full-extent block, no padding anywhere.
    B2 = 10
    x2 = jax.random.normal(kx, (B2, IMG_DIM), jnp.float32)
    out2 = jax.block_until_ready(discriminator_forward(x2, w1, b1, w2, b2))
    ref2 = reference_forward(x2, w1, b1, w2, b2)
    assert out2.shape == (B2, 1)
    assert jnp.max(jnp.abs(out2 - ref2)) < 2e-2, "mismatch vs reference (small batch)"

    print("KERNEL_OK")
</pallas_src>

<mosaic_0001>
module attributes {stable_mosaic.version = 11 : i64} {
  func.func @discriminator_kernel(%arg0: i32, %arg1: memref<128x784xf32, #tpu.memory_space<vmem>>, %arg2: memref<784x128xbf16, #tpu.memory_space<vmem>>, %arg3: memref<1x128xf32, #tpu.memory_space<vmem>>, %arg4: memref<1x128xbf16, #tpu.memory_space<vmem>>, %arg5: memref<1x1xf32, #tpu.memory_space<smem>>, %arg6: memref<1x128xf32, #tpu.memory_space<vmem>>) attributes {dimension_semantics = [#tpu.dimension_semantics<parallel>], iteration_bounds = array<i64: 3>, scalar_prefetch = 0 : i64, scratch_operands = 0 : i64, tpu.core_type = #tpu.core_type<tc>, window_params = [{transform_indices = @transform_0, window_bounds = array<i64: 128, 784>}, {pipeline_mode = #tpu.pipeline_mode<synchronous>, transform_indices = @transform_1, window_bounds = array<i64: 784, 128>}, {pipeline_mode = #tpu.pipeline_mode<synchronous>, transform_indices = @transform_2, window_bounds = array<i64: 1, 128>}, {pipeline_mode = #tpu.pipeline_mode<synchronous>, transform_indices = @transform_3, window_bounds = array<i64: 1, 128>}, {transform_indices = @transform_4, window_bounds = array<i64: 1, 1>}, {transform_indices = @transform_5, window_bounds = array<i64: 1, 128>}]} {
    %c0 = arith.constant 0 : index
    %c0_0 = arith.constant 0 : index
    %0 = vector.load %arg1[%c0, %c0_0] : memref<128x784xf32, #tpu.memory_space<vmem>>, vector<128x784xf32>
    %1 = arith.truncf %0 : vector<128x784xf32> to vector<128x784xbf16>
    %c0_1 = arith.constant 0 : index
    %c0_2 = arith.constant 0 : index
    %2 = vector.load %arg2[%c0_1, %c0_2] : memref<784x128xbf16, #tpu.memory_space<vmem>>, vector<784x128xbf16>
    %cst = arith.constant dense<0.000000e+00> : vector<128x128xf32>
    %3 = tpu.matmul %1, %2, %cst {dimension_numbers = #tpu.dot_dimension_numbers<[1], [0], [0], [1], [0, 0, 1, 1], [], []>} : vector<128x784xbf16>, vector<784x128xbf16>, vector<128x128xf32> -> vector<128x128xf32>
    %c0_3 = arith.constant 0 : index
    %c0_4 = arith.constant 0 : index
    %4 = vector.load %arg3[%c0_3, %c0_4] : memref<1x128xf32, #tpu.memory_space<vmem>>, vector<1x128xf32>
    %5 = vector.broadcast %4 : vector<1x128xf32> to vector<128x128xf32>
    %6 = arith.addf %3, %5 : vector<128x128xf32>
    %cst_5 = arith.constant 0.000000e+00 : f32
    %7 = vector.broadcast %cst_5 : f32 to vector<128x128xf32>
    %8 = arith.cmpf ogt, %6, %7 : vector<128x128xf32>
    %cst_6 = arith.constant 1.000000e-01 : f32
    %9 = vector.broadcast %cst_6 : f32 to vector<128x128xf32>
    %10 = arith.mulf %9, %6 : vector<128x128xf32>
    %11 = arith.select %8, %6, %10 : vector<128x128xi1>, vector<128x128xf32>
    %c0_7 = arith.constant 0 : index
    %c0_8 = arith.constant 0 : index
    %12 = vector.load %arg4[%c0_7, %c0_8] : memref<1x128xbf16, #tpu.memory_space<vmem>>, vector<1x128xbf16>
    %13 = arith.truncf %11 : vector<128x128xf32> to vector<128x128xbf16>
    %cst_9 = arith.constant dense<0.000000e+00> : vector<1x128xf32>
    %14 = tpu.matmul %12, %13, %cst_9 {dimension_numbers = #tpu.dot_dimension_numbers<[1], [1], [0], [0], [0, 0, 1, 0], [], []>} : vector<1x128xbf16>, vector<128x128xbf16>, vector<1x128xf32> -> vector<1x128xf32>
    %c0_10 = arith.constant 0 : index
    %c0_11 = arith.constant 0 : index
    %15 = memref.load %arg5[%c0_10, %c0_11] : memref<1x1xf32, #tpu.memory_space<smem>>
    %16 = vector.broadcast %15 : f32 to vector<1x128xf32>
    %17 = arith.addf %14, %16 : vector<1x128xf32>
    %cst_12 = arith.constant 0.000000e+00 : f32
    %18 = vector.broadcast %cst_12 : f32 to vector<1x128xf32>
    %19 = arith.subf %18, %17 : vector<1x128xf32>
    %20 = math.exp %19 : vector<1x128xf32>
    %cst_13 = arith.constant 1.000000e+00 : f32
    %21 = vector.broadcast %cst_13 : f32 to vector<1x128xf32>
    %22 = arith.addf %21, %20 : vector<1x128xf32>
    %23 = tpu.reciprocal %22 {approx = true} : vector<1x128xf32> -> vector<1x128xf32>
    %c0_14 = arith.constant 0 : index
    %c0_15 = arith.constant 0 : index
    %24 = vector.load %arg6[%c0_14, %c0_15] : memref<1x128xf32, #tpu.memory_space<vmem>>, vector<1x128xf32>
    tpu.vector_store %arg6[%c0_14, %c0_15], %23 {strides = array<i32>} : memref<1x128xf32, #tpu.memory_space<vmem>>, vector<1x128xf32>,
    return
  }
  func.func @transform_0(%arg0: i32) -> (i32, i32) {
    %c0_i32 = arith.constant 0 : i32
    %c0_i32_0 = arith.constant 0 : i32
    return %arg0, %c0_i32 : i32, i32
  }
  func.func @transform_1(%arg0: i32) -> (i32, i32) {
    %c0_i32 = arith.constant 0 : i32
    %c0_i32_0 = arith.constant 0 : i32
    %c0_i32_1 = arith.constant 0 : i32
    return %c0_i32, %c0_i32_0 : i32, i32
  }
  func.func @transform_2(%arg0: i32) -> (i32, i32) {
    %c0_i32 = arith.constant 0 : i32
    %c0_i32_0 = arith.constant 0 : i32
    %c0_i32_1 = arith.constant 0 : i32
    return %c0_i32, %c0_i32_0 : i32, i32
  }
  func.func @transform_3(%arg0: i32) -> (i32, i32) {
    %c0_i32 = arith.constant 0 : i32
    %c0_i32_0 = arith.constant 0 : i32
    %c0_i32_1 = arith.constant 0 : i32
    return %c0_i32, %c0_i32_0 : i32, i32
  }
  func.func @transform_4(%arg0: i32) -> (i32, i32) {
    %c0_i32 = arith.constant 0 : i32
    %c0_i32_0 = arith.constant 0 : i32
    %c0_i32_1 = arith.constant 0 : i32
    return %c0_i32, %c0_i32_0 : i32, i32
  }
  func.func @transform_5(%arg0: i32) -> (i32, i32) {
    %c0_i32 = arith.constant 0 : i32
    %c0_i32_0 = arith.constant 0 : i32
    return %c0_i32, %arg0 : i32, i32
  }
}

</mosaic_0001>

<llo_original>
// kernel: discriminator_forward.1
$region0: #{discriminator_forward.1}
  #allocation0 [shape = 'u32[]', space=smem, size = 0x4, offset = 0x4, fixed_abs, tag = 'smem constant byte address 0x4 - core index']
  #allocation1 [shape = 'u32[144,128]{1,0:T(1,128)}', space=vmem, size = 0x12000, scoped, tag = 'internal scratch']
  #allocation2 [shape = 'f32[1,1]{1,0:T(1,128)S(6)}', space=smem, size = 0x200, scoped, tag = 'scoped memory for discriminator_forward.1']
  %s0 = inlined_call_operand.hbm [shape: f32[300,784], index: 0, kind: input, shape index: {}]
  %s1 = inlined_call_operand.vmem [shape: bf16[784,128], index: 1, kind: input, shape index: {}]
  %s2 = inlined_call_operand.hbm [shape: f32[1,128], index: 2, kind: input, shape index: {}]
  %s3 = inlined_call_operand.vmem [shape: bf16[1,128], index: 3, kind: input, shape index: {}]
  %s4 = inlined_call_operand.<no memory space> [shape: f32[1,1], index: 4, kind: input, shape index: {}]
  %s5 = inlined_call_operand.vmem [shape: f32[1,384], index: 5, kind: output, shape index: {}]
  %s6 = sld [smem:[#allocation0]]
  $region61: #{discriminator_forward.1} parent=0
    _
  %s8 = ssub.s32 1, %s6
  %s9 = scalar_select 0, %s8, %s6
  %10 = sst [smem:[#allocation2]] %s4
  $region1: #{discriminator_forward.1} parent=0
    #allocation3 [shape = 'u8[917504]{0}', space=vmem, size = 0xe0000, scoped, tag = 'input window, operand 0']
    #allocation4 [shape = 's32[2]{0}', space=sflag, size = 0x8, scoped, tag = 'scoped memory for discriminator_forward.1']
    #allocation5 [shape = 'u8[512]{0}', space=vmem, size = 0x400, scoped, tag = 'input window, operand 2, single buffered']
    #allocation6 [shape = 's32[1]{0}', space=sflag, size = 0x4, scoped, tag = 'scoped memory for discriminator_forward.1']
    %11 = vsyncpa [#allocation4], 0
    %s12 = scalar_lea.sflag [#allocation4], 1
    %13 = vsyncpa %s12, 0
    %14 = vsyncpa [#allocation6], 0
    loop: start=0, step=1, limit=5
    $region2: #{discriminator_forward.1} parent=1 // loop_pre_header
      _
    $region3: #{discriminator_forward.1} parent=1 // loop_header
      %s16 = sphi 0, %s20
      %p17 = scmp.ge.s32.totalorder %s16, 5
      %s26 = sphi 0, %s28
      %s29 = sphi 0, %s26
      %s30 = sphi 0, %s29
      %s46 = sphi 0, %s30
      %s50 = sphi 0, %s50
      %s52 = sphi 0, %s50
      %s53 = sphi 0, %s52
      %s67 = sphi 0, %s53
      %s71 = sphi 0, %s71
      %s73 = sphi 0, %s71
      %s74 = sphi 0, %s73
      %s88 = sphi 0, %s74
      %s92 = sphi 0, %s92
      %s94 = sphi 0, %s92
      %s95 = sphi 0, %s94
      %s109 = sphi 0, %s95
      %s113 = sphi 0, %s113
      %s115 = sphi 0, %s113
      %s116 = sphi 0, %s115
      %s130 = sphi 0, %s116
      %s136 = sphi 0, %s138
      %s139 = sphi 0, %s136
      %s140 = sphi 0, %s139
      %s156 = sphi 0, %s140
    $region4: #{discriminator_forward.1} parent=1 // loop_header_branch
      %19 = sbr.rel (%p17) target = $region8
    $region5: #{discriminator_forward.1} parent=1 // loop_body
      %s21 = ssub.s32 %s16, 1
      %s22 = ssub.s32 %s16, 2
      %s23 = sadd.s32 %s16, 1
      %s24 = ssub.s32 %s16, %s23
      %p25 = scmp.eq.s32.totalorder %s24, 0
      %s27 = sadd.s32 %s26, 1
      %s28 = scalar_select %p25, %s26, %s27
      %p31 = pneg %p25
      %p32 = scmp.eq.s32.totalorder %s16, 2
      %p33 = por %p31, %p32
      %p34 = scmp.ne.s32.totalorder %s26, %s29
      %p35 = scmp.eq.s32.totalorder %s16, 0
      %p36 = por %p34, %p35
      %p37 = scmp.ne.s32.totalorder %s26, %s29
      %p38 = scmp.eq.s32.totalorder %s21, 2
      %p39 = por %p37, %p38
      %p40 = scmp.ne.s32.totalorder %s29, %s30
      %p41 = scmp.eq.s32.totalorder %s21, 0
      %p42 = por %p40, %p41
      %p43 = scmp.ne.s32.totalorder %s29, %s30
      %p44 = scmp.eq.s32.totalorder %s22, 2
      %p45 = por %p43, %p44
      %p47 = scmp.ne.s32.totalorder %s30, %s46
      %p48 = scmp.eq.s32.totalorder %s22, 0
      %p49 = por %p47, %p48
      %s51 = sadd.s32 %s50, 1
      %p54 = scmp.eq.s32.totalorder %s16, 2
      %p55 = scmp.ne.s32.totalorder %s50, %s52
      %p56 = scmp.eq.s32.totalorder %s16, 0
      %p57 = por %p55, %p56
      %p58 = scmp.ne.s32.totalorder %s50, %s52
      %p59 = scmp.eq.s32.totalorder %s21, 2
      %p60 = por %p58, %p59
      %p61 = scmp.ne.s32.totalorder %s52, %s53
      %p62 = scmp.eq.s32.totalorder %s21, 0
      %p63 = por %p61, %p62
      %p64 = scmp.ne.s32.totalorder %s52, %s53
      %p65 = scmp.eq.s32.totalorder %s22, 2
      %p66 = por %p64, %p65
      %p68 = scmp.ne.s32.totalorder %s53, %s67
      %p69 = scmp.eq.s32.totalorder %s22, 0
      %p70 = por %p68, %p69
      %s72 = sadd.s32 %s71, 1
      %p75 = scmp.eq.s32.totalorder %s16, 2
      %p76 = scmp.ne.s32.totalorder %s71, %s73
      %p77 = scmp.eq.s32.totalorder %s16, 0
      %p78 = por %p76, %p77
      %p79 = scmp.ne.s32.totalorder %s71, %s73
      %p80 = scmp.eq.s32.totalorder %s21, 2
      %p81 = por %p79, %p80
      %p82 = scmp.ne.s32.totalorder %s73, %s74
      %p83 = scmp.eq.s32.totalorder %s21, 0
      %p84 = por %p82, %p83
      %p85 = scmp.ne.s32.totalorder %s73, %s74
      %p86 = scmp.eq.s32.totalorder %s22, 2
      %p87 = por %p85, %p86
      %p89 = scmp.ne.s32.totalorder %s74, %s88
      %p90 = scmp.eq.s32.totalorder %s22, 0
      %p91 = por %p89, %p90
      %s93 = sadd.s32 %s92, 1
      %p96 = scmp.eq.s32.totalorder %s16, 2
      %p97 = scmp.ne.s32.totalorder %s92, %s94
      %p98 = scmp.eq.s32.totalorder %s16, 0
      %p99 = por %p97, %p98
      %p100 = scmp.ne.s32.totalorder %s92, %s94
      %p101 = scmp.eq.s32.totalorder %s21, 2
      %p102 = por %p100, %p101
      %p103 = scmp.ne.s32.totalorder %s94, %s95
      %p104 = scmp.eq.s32.totalorder %s21, 0
      %p105 = por %p103, %p104
      %p106 = scmp.ne.s32.totalorder %s94, %s95
      %p107 = scmp.eq.s32.totalorder %s22, 2
      %p108 = por %p106, %p107
      %p110 = scmp.ne.s32.totalorder %s95, %s109
      %p111 = scmp.eq.s32.totalorder %s22, 0
      %p112 = por %p110, %p111
      %s114 = sadd.s32 %s113, 1
      %p117 = scmp.eq.s32.totalorder %s16, 2
      %p118 = scmp.ne.s32.totalorder %s113, %s115
      %p119 = scmp.eq.s32.totalorder %s16, 0
      %p120 = por %p118, %p119
      %p121 = scmp.ne.s32.totalorder %s113, %s115
      %p122 = scmp.eq.s32.totalorder %s21, 2
      %p123 = por %p121, %p122
      %p124 = scmp.ne.s32.totalorder %s115, %s116
      %p125 = scmp.eq.s32.totalorder %s21, 0
      %p126 = por %p124, %p125
      %p127 = scmp.ne.s32.totalorder %s115, %s116
      %p128 = scmp.eq.s32.totalorder %s22, 2
      %p129 = por %p127, %p128
      %p131 = scmp.ne.s32.totalorder %s116, %s130
      %p132 = scmp.eq.s32.totalorder %s22, 0
      %p133 = por %p131, %p132
      %s134 = ssub.s32 %s16, %s23
      %p135 = scmp.eq.s32.totalorder %s134, 0
      %s137 = sadd.s32 %s136, 1
      %s138 = scalar_select %p135, %s136, %s137
      %p141 = pneg %p135
      %p142 = scmp.eq.s32.totalorder %s16, 2
      %p143 = por %p141, %p142
      %p144 = scmp.ne.s32.totalorder %s136, %s139
      %p145 = scmp.eq.s32.totalorder %s16, 0
      %p146 = por %p144, %p145
      %p147 = scmp.ne.s32.totalorder %s136, %s139
      %p148 = scmp.eq.s32.totalorder %s21, 2
      %p149 = por %p147, %p148
      %p150 = scmp.ne.s32.totalorder %s139, %s140
      %p151 = scmp.eq.s32.totalorder %s21, 0
      %p152 = por %p150, %p151
      %p153 = scmp.ne.s32.totalorder %s139, %s140
      %p154 = scmp.eq.s32.totalorder %s22, 2
      %p155 = por %p153, %p154
      %p157 = scmp.ne.s32.totalorder %s140, %s156
      %p158 = scmp.eq.s32.totalorder %s22, 0
      %p159 = por %p157, %p158
      %p160 = scmp.le.s32.totalorder 1, %s16
      %p161 = scmp.lt.s32.totalorder %s16, 4
      %p162 = pnand %p160, %p161
      %p163 = pneg %p162
      // Predicated region
      $region9: #{discriminator_forward.1} parent=5 // pred_check
        _
      $region10: #{discriminator_forward.1} parent=5 // pred_check_branch
        %165 = sbr.rel (%p162) target = $region12
      $region11: #{discriminator_forward.1} parent=5 // pred_region
        %s166 = ssub.s32 %s16, 1
        // Predicated region
        $region13: #{discriminator_forward.1} parent=11 // pred_check
          %p167 = pneg %p63
        $region14: #{discriminator_forward.1} parent=11 // pred_check_branch
          %169 = sbr.rel (%p167) target = $region16
        $region15: #{discriminator_forward.1} parent=11 // pred_region
          _
        $region16: #{discriminator_forward.1} parent=11 // pred_fallthru
          _
        // Predicated region
        $region17: #{discriminator_forward.1} parent=11 // pred_check
          %p170 = pneg %p84
        $region18: #{discriminator_forward.1} parent=11 // pred_check_branch
          %172 = sbr.rel (%p170) target = $region20
        $region19: #{discriminator_forward.1} parent=11 // pred_region
          %s174 = ssub.s32 16, 16
          %175 = vsyncadd [#allocation6], %s174
          %s177 = sshll.u32 [#allocation5], 4
          %s178 = int_to_ptr.vmem [resolvable:$true] %s177
          %180 = dma.hbm_to_vmem [thread:$0]  %s2, 16, %s178, [#allocation6]
        $region20: #{discriminator_forward.1} parent=11 // pred_fallthru
          _
        // Predicated region
        $region21: #{discriminator_forward.1} parent=11 // pred_check
          %p181 = pneg %p105
        $region22: #{discriminator_forward.1} parent=11 // pred_check_branch
          %183 = sbr.rel (%p181) target = $region24
        $region23: #{discriminator_forward.1} parent=11 // pred_region
          _
        $region24: #{discriminator_forward.1} parent=11 // pred_fallthru
          _
        // Predicated region
        $region25: #{discriminator_forward.1} parent=11 // pred_check
          %p184 = pneg %p126
        $region26: #{discriminator_forward.1} parent=11 // pred_check_branch
          %186 = sbr.rel (%p184) target = $region28
        $region27: #{discriminator_forward.1} parent=11 // pred_region
          _
        $region28: #{discriminator_forward.1} parent=11 // pred_fallthru
          _
      $region12: #{discriminator_forward.1} parent=5 // pred_fallthru
        _
      %p187 = scmp.lt.s32.totalorder %s16, 3
      // Predicated region
      $region29: #{discriminator_forward.1} parent=5 // pred_check
        %p188 = pneg %p187
      $region30: #{discriminator_forward.1} parent=5 // pred_check_branch
        %190 = sbr.rel (%p188) target = $region32
      $region31: #{discriminator_forward.1} parent=5 // pred_region
        // Predicated region
        $region33: #{discriminator_forward.1} parent=31 // pred_check
          %p191 = pneg %p36
        $region34: #{discriminator_forward.1} parent=31 // pred_check_branch
          %193 = sbr.rel (%p191) target = $region36
        $region35: #{discriminator_forward.1} parent=31 // pred_region
          %s194 = sand.u32 %s26, 1
          %s195 = scalar_lea.sflag [#allocation4], %s194
          %s196 = sand.u32 %s26, 1
          %s197 = smul.addr %s196, 896
          %s198 = scalar_lea.vmem [#allocation3], %s197
          %s199 = smul.u32 16, %s16
          %s200 = ssub.s32 38, %s199
          %p201 = scmp.lt.s32.totalorder %s200, 16
          %s202 = scalar_select %p201, %s200, 16
          %s203 = smul.u32 128, %s202
          %s204 = smul.u32 %s203, 7
          %s206 = ssub.s32 14336, %s204
          %207 = vsyncadd %s195, %s206
          %p208 = scmp.ne.s32.totalorder 0, %s204
          %s209 = smul.addr %s199, 7
          %s210 = smul.addr %s209, 128
          %s211 = scalar_lea.hbm %s0, %s210
          %s212 = smul.u32 56, %s202
          %s213 = sshll.u32 %s198, 4
          %s214 = int_to_ptr.vmem [resolvable:$true] %s213
          %s215 = sshll.u32 %s212, 4
          %219 = dma.hbm_to_vmem [thread:$0]  (%p208), %s211, %s215, %s214, %s195, 896, 896, 56
        $region36: #{discriminator_forward.1} parent=31 // pred_fallthru
          _
      $region32: #{discriminator_forward.1} parent=5 // pred_fallthru
        _
      %p220 = scmp.le.s32.totalorder 1, %s16
      %p221 = scmp.lt.s32.totalorder %s16, 4
      %p222 = pnand %p220, %p221
      %p223 = pneg %p222
      // Predicated region
      $region37: #{discriminator_forward.1} parent=5 // pred_check
        _
      $region38: #{discriminator_forward.1} parent=5 // pred_check_branch
        %225 = sbr.rel (%p222) target = $region40
      $region39: #{discriminator_forward.1} parent=5 // pred_region
        %s226 = ssub.s32 %s16, 1
        %s227 = sand.u32 %s29, 1
        %s228 = scalar_lea.sflag [#allocation4], %s227
        %s229 = sand.u32 %s29, 1
        %s230 = smul.addr %s229, 896
        %s231 = scalar_lea.vmem [#allocation3], %s230
        // Predicated region
        $region41: #{discriminator_forward.1} parent=39 // pred_check
          %p232 = pneg %p42
        $region42: #{discriminator_forward.1} parent=39 // pred_check_branch
          %234 = sbr.rel (%p232) target = $region44
        $region43: #{discriminator_forward.1} parent=39 // pred_region
          %235 = dma.done %s228, 14336
        $region44: #{discriminator_forward.1} parent=39 // pred_fallthru
          _
        // Predicated region
        $region45: #{discriminator_forward.1} parent=39 // pred_check
          %p236 = pneg %p84
        $region46: #{discriminator_forward.1} parent=39 // pred_check_branch
          %238 = sbr.rel (%p236) target = $region48
        $region47: #{discriminator_forward.1} parent=39 // pred_region
          %239 = dma.done [#allocation6], 16
        $region48: #{discriminator_forward.1} parent=39 // pred_fallthru
          _
        %s240 = sand.u32 %s29, 1
        %s241 = scalar_lea.sflag [#allocation4], %s240
        %s242 = sand.u32 %s29, 1
        %s243 = smul.addr %s242, 896
        %s244 = scalar_lea.vmem [#allocation3], %s243
        %p245 = pneg %p42
        %p246 = pneg %p39
        %p247 = pneg %p63
        %p248 = pneg %p60
        %p249 = pneg %p84
        %p250 = pneg %p81
        %p251 = pneg %p105
        %p252 = pneg %p102
        %p253 = pneg %p126
        %p254 = pneg %p123
        %p255 = pneg %p152
        %p256 = pneg %p149
        %p257 = scmp.lt.s32.totalorder %s21, 2
        %s258 = scalar_select %p257, %s21, 2
        %s259 = scalar_lea.vmem %s5, %s258
        %s260 = smul.u32 16, %s21
        %s261 = ssub.s32 38, %s260
        %p262 = scmp.lt.s32.totalorder %s261, 16
        %s263 = scalar_select %p262, %s261, 16
        %s264 = smul.u32 128, %s263
        %s265 = smul.u32 %s264, 7
        %p266 = scmp.lt.s32.totalorder %s21, 2
        %s267 = scalar_select %p266, %s21, 2
        %s268 = scalar_lea.vmem %s5, %s267
        %v270 = vld [vmem:[%s231] sm:$0xff]
        %v271 = vld [vmem:[%s231 + $0x8] sm:$0xff]
        %v272 = vld [vmem:[%s231 + $0x10] sm:$0xff]
        %v273 = vld [vmem:[%s231 + $0x18] sm:$0xff]
        %v274 = vld [vmem:[%s231 + $0x20] sm:$0xff]
        %v275 = vld [vmem:[%s231 + $0x28] sm:$0xff]
        %v276 = vld [vmem:[%s231 + $0x30] sm:$0xff]
        %v277 = vld [vmem:[%s231 + $0x38] sm:$0xff]
        %v278 = vld [vmem:[%s231 + $0x40] sm:$0xff]
        %v279 = vld [vmem:[%s231 + $0x48] sm:$0xff]
        %v280 = vld [vmem:[%s231 + $0x50] sm:$0xff]
        %v281 = vld [vmem:[%s231 + $0x58] sm:$0xff]
        %v282 = vld [vmem:[%s231 + $0x60] sm:$0xff]
        %v283 = vld [vmem:[%s231 + $0x68] sm:$0xff]
        %v284 = vld [vmem:[%s231 + $0x70] sm:$0xff]
        %v285 = vld [vmem:[%s231 + $0x78] sm:$0xff]
        %v286 = vld [vmem:[%s231 + $0x80] sm:$0xff]
        %v287 = vld [vmem:[%s231 + $0x88] sm:$0xff]
        %v288 = vld [vmem:[%s231 + $0x90] sm:$0xff]
        %v289 = vld [vmem:[%s231 + $0x98] sm:$0xff]
        %v290 = vld [vmem:[%s231 + $0xa0] sm:$0xff]
        %v291 = vld [vmem:[%s231 + $0xa8] sm:$0xff]
        %v292 = vld [vmem:[%s231 + $0xb0] sm:$0xff]
        %v293 = vld [vmem:[%s231 + $0xb8] sm:$0xff]
        %v294 = vld [vmem:[%s231 + $0xc0] sm:$0xff]
        %v295 = vld [vmem:[%s231 + $0xc8] sm:$0xff]
        %v296 = vld [vmem:[%s231 + $0xd0] sm:$0xff]
        %v297 = vld [vmem:[%s231 + $0xd8] sm:$0xff]
        %v298 = vld [vmem:[%s231 + $0xe0] sm:$0xff]
        %v299 = vld [vmem:[%s231 + $0xe8] sm:$0xff]
        %v300 = vld [vmem:[%s231 + $0xf0] sm:$0xff]
        %v301 = vld [vmem:[%s231 + $0xf8] sm:$0xff]
        %v302 = vld [vmem:[%s231 + $0x100] sm:$0xff]
        %v303 = vld [vmem:[%s231 + $0x108] sm:$0xff]
        %v304 = vld [vmem:[%s231 + $0x110] sm:$0xff]
        %v305 = vld [vmem:[%s231 + $0x118] sm:$0xff]
        %v306 = vld [vmem:[%s231 + $0x120] sm:$0xff]
        %v307 = vld [vmem:[%s231 + $0x128] sm:$0xff]
        %v308 = vld [vmem:[%s231 + $0x130] sm:$0xff]
        %v309 = vld [vmem:[%s231 + $0x138] sm:$0xff]
        %v310 = vld [vmem:[%s231 + $0x140] sm:$0xff]
        %v311 = vld [vmem:[%s231 + $0x148] sm:$0xff]
        %v312 = vld [vmem:[%s231 + $0x150] sm:$0xff]
        %v313 = vld [vmem:[%s231 + $0x158] sm:$0xff]
        %v314 = vld [vmem:[%s231 + $0x160] sm:$0xff]
        %v315 = vld [vmem:[%s231 + $0x168] sm:$0xff]
        %v316 = vld [vmem:[%s231 + $0x170] sm:$0xff]
        %v317 = vld [vmem:[%s231 + $0x178] sm:$0xff]
        %v318 = vld [vmem:[%s231 + $0x180] sm:$0xff]
        %v319 = vld [vmem:[%s231 + $0x188] sm:$0xff]
        %v320 = vld [vmem:[%s231 + $0x190] sm:$0xff]
        %v321 = vld [vmem:[%s231 + $0x198] sm:$0xff]
        %v322 = vld [vmem:[%s231 + $0x1a0] sm:$0xff]
        %v323 = vld [vmem:[%s231 + $0x1a8] sm:$0xff]
        %v324 = vld [vmem:[%s231 + $0x1b0] sm:$0xff]
        %v325 = vld [vmem:[%s231 + $0x1b8] sm:$0xff]
        %v326 = vld [vmem:[%s231 + $0x1c0] sm:$0xff]
        %v327 = vld [vmem:[%s231 + $0x1c8] sm:$0xff]
        %v328 = vld [vmem:[%s231 + $0x1d0] sm:$0xff]
        %v329 = vld [vmem:[%s231 + $0x1d8] sm:$0xff]
        %v330 = vld [vmem:[%s231 + $0x1e0] sm:$0xff]
        %v331 = vld [vmem:[%s231 + $0x1e8] sm:$0xff]
        %v332 = vld [vmem:[%s231 + $0x1f0] sm:$0xff]
        %v333 = vld [vmem:[%s231 + $0x1f8] sm:$0xff]
        %v334 = vld [vmem:[%s231 + $0x200] sm:$0xff]
        %v335 = vld [vmem:[%s231 + $0x208] sm:$0xff]
        %v336 = vld [vmem:[%s231 + $0x210] sm:$0xff]
        %v337 = vld [vmem:[%s231 + $0x218] sm:$0xff]
        %v338 = vld [vmem:[%s231 + $0x220] sm:$0xff]
        %v339 = vld [vmem:[%s231 + $0x228] sm:$0xff]
        %v340 = vld [vmem:[%s231 + $0x230] sm:$0xff]
        %v341 = vld [vmem:[%s231 + $0x238] sm:$0xff]
        %v342 = vld [vmem:[%s231 + $0x240] sm:$0xff]
        %v343 = vld [vmem:[%s231 + $0x248] sm:$0xff]
        %v344 = vld [vmem:[%s231 + $0x250] sm:$0xff]
        %v345 = vld [vmem:[%s231 + $0x258] sm:$0xff]
        %v346 = vld [vmem:[%s231 + $0x260] sm:$0xff]
        %v347 = vld [vmem:[%s231 + $0x268] sm:$0xff]
        %v348 = vld [vmem:[%s231 + $0x270] sm:$0xff]
        %v349 = vld [vmem:[%s231 + $0x278] sm:$0xff]
        %v350 = vld [vmem:[%s231 + $0x280] sm:$0xff]
        %v351 = vld [vmem:[%s231 + $0x288] sm:$0xff]
        %v352 = vld [vmem:[%s231 + $0x290] sm:$0xff]
        %v353 = vld [vmem:[%s231 + $0x298] sm:$0xff]
        %v354 = vld [vmem:[%s231 + $0x2a0] sm:$0xff]
        %v355 = vld [vmem:[%s231 + $0x2a8] sm:$0xff]
        %v356 = vld [vmem:[%s231 + $0x2b0] sm:$0xff]
        %v357 = vld [vmem:[%s231 + $0x2b8] sm:$0xff]
        %v358 = vld [vmem:[%s231 + $0x2c0] sm:$0xff]
        %v359 = vld [vmem:[%s231 + $0x2c8] sm:$0xff]
        %v360 = vld [vmem:[%s231 + $0x2d0] sm:$0xff]
        %v361 = vld [vmem:[%s231 + $0x2d8] sm:$0xff]
        %v362 = vld [vmem:[%s231 + $0x2e0] sm:$0xff]
        %v363 = vld [vmem:[%s231 + $0x2e8] sm:$0xff]
        %v364 = vld [vmem:[%s231 + $0x2f0] sm:$0xff]
        %v365 = vld [vmem:[%s231 + $0x2f8] sm:$0xff]
        %v366 = vld [vmem:[%s231 + $0x300] sm:$0xff]
        %v367 = vld [vmem:[%s231 + $0x308] sm:$0xff]
        %v368 = vld [vmem:[%s231 + $0x310] sm:$0xff]
        %v369 = vld [vmem:[%s231 + $0x318] sm:$0xff]
        %v370 = vld [vmem:[%s231 + $0x320] sm:$0xff]
        %v371 = vld [vmem:[%s231 + $0x328] sm:$0xff]
        %v372 = vld [vmem:[%s231 + $0x330] sm:$0xff]
        %v373 = vld [vmem:[%s231 + $0x338] sm:$0xff]
        %v374 = vld [vmem:[%s231 + $0x340] sm:$0xff]
        %v375 = vld [vmem:[%s231 + $0x348] sm:$0xff]
        %v376 = vld [vmem:[%s231 + $0x350] sm:$0xff]
        %v377 = vld [vmem:[%s231 + $0x358] sm:$0xff]
        %v378 = vld [vmem:[%s231 + $0x360] sm:$0xff]
        %v379 = vld [vmem:[%s231 + $0x368] sm:$0xff]
        %v380 = vld [vmem:[%s231 + $0x370] sm:$0xff]
        %v381 = vld [vmem:[%s231 + $0x378] sm:$0xff]
        %v382 = vpack.c.bf16 %v277, %v270
        %v383 = vpack.c.bf16 %v278, %v271
        %v384 = vpack.c.bf16 %v279, %v272
        %v385 = vpack.c.bf16 %v280, %v273
        %v386 = vpack.c.bf16 %v281, %v274
        %v387 = vpack.c.bf16 %v282, %v275
        %v388 = vpack.c.bf16 %v283, %v276
        %v389 = vpack.c.bf16 %v291, %v284
        %v390 = vpack.c.bf16 %v292, %v285
        %v391 = vpack.c.bf16 %v293, %v286
        %v392 = vpack.c.bf16 %v294, %v287
        %v393 = vpack.c.bf16 %v295, %v288
        %v394 = vpack.c.bf16 %v296, %v289
        %v395 = vpack.c.bf16 %v297, %v290
        %v396 = vpack.c.bf16 %v305, %v298
        %v397 = vpack.c.bf16 %v306, %v299
        %v398 = vpack.c.bf16 %v307, %v300
        %v399 = vpack.c.bf16 %v308, %v301
        %v400 = vpack.c.bf16 %v309, %v302
        %v401 = vpack.c.bf16 %v310, %v303
        %v402 = vpack.c.bf16 %v311, %v304
        %v403 = vpack.c.bf16 %v319, %v312
        %v404 = vpack.c.bf16 %v320, %v313
        %v405 = vpack.c.bf16 %v321, %v314
        %v406 = vpack.c.bf16 %v322, %v315
        %v407 = vpack.c.bf16 %v323, %v316
        %v408 = vpack.c.bf16 %v324, %v317
        %v409 = vpack.c.bf16 %v325, %v318
        %v410 = vpack.c.bf16 %v333, %v326
        %v411 = vpack.c.bf16 %v334, %v327
        %v412 = vpack.c.bf16 %v335, %v328
        %v413 = vpack.c.bf16 %v336, %v329
        %v414 = vpack.c.bf16 %v337, %v330
        %v415 = vpack.c.bf16 %v338, %v331
        %v416 = vpack.c.bf16 %v339, %v332
        %v417 = vpack.c.bf16 %v347, %v340
        %v418 = vpack.c.bf16 %v348, %v341
        %v419 = vpack.c.bf16 %v349, %v342
        %v420 = vpack.c.bf16 %v350, %v343
        %v421 = vpack.c.bf16 %v351, %v344
        %v422 = vpack.c.bf16 %v352, %v345
        %v423 = vpack.c.bf16 %v353, %v346
        %v424 = vpack.c.bf16 %v361, %v354
        %v425 = vpack.c.bf16 %v362, %v355
        %v426 = vpack.c.bf16 %v363, %v356
        %v427 = vpack.c.bf16 %v364, %v357
        %v428 = vpack.c.bf16 %v365, %v358
        %v429 = vpack.c.bf16 %v366, %v359
        %v430 = vpack.c.bf16 %v367, %v360
        %v431 = vpack.c.bf16 %v375, %v368
        %v432 = vpack.c.bf16 %v376, %v369
        %v433 = vpack.c.bf16 %v377, %v370
        %v434 = vpack.c.bf16 %v378, %v371
        %v435 = vpack.c.bf16 %v379, %v372
        %v436 = vpack.c.bf16 %v380, %v373
        %v437 = vpack.c.bf16 %v381, %v374
        %v438 = vld [vmem:[%s1] sm:$0xf]
        %v439 = vld [vmem:[%s1 + $0x4] sm:$0xf]
        %v440 = vld [vmem:[%s1 + $0x8] sm:$0xf]
        %v441 = vld [vmem:[%s1 + $0xc] sm:$0xf]
        %v442 = vld [vmem:[%s1 + $0x10] sm:$0xf]
        %v443 = vld [vmem:[%s1 + $0x14] sm:$0xf]
        %v444 = vld [vmem:[%s1 + $0x18] sm:$0xf]
        %v445 = vld [vmem:[%s1 + $0x1c] sm:$0xf]
        %v446 = vld [vmem:[%s1 + $0x20] sm:$0xf]
        %v447 = vld [vmem:[%s1 + $0x24] sm:$0xf]
        %v448 = vld [vmem:[%s1 + $0x28] sm:$0xf]
        %v449 = vld [vmem:[%s1 + $0x2c] sm:$0xf]
        %v450 = vld [vmem:[%s1 + $0x30] sm:$0xf]
        %v451 = vld [vmem:[%s1 + $0x34] sm:$0xf]
        %v452 = vld [vmem:[%s1 + $0x38] sm:$0xf]
        %v453 = vld [vmem:[%s1 + $0x3c] sm:$0xf]
        %v454 = vld [vmem:[%s1 + $0x40] sm:$0xf]
        %v455 = vld [vmem:[%s1 + $0x44] sm:$0xf]
        %v456 = vld [vmem:[%s1 + $0x48] sm:$0xf]
        %v457 = vld [vmem:[%s1 + $0x4c] sm:$0xf]
        %v458 = vld [vmem:[%s1 + $0x50] sm:$0xf]
        %v459 = vld [vmem:[%s1 + $0x54] sm:$0xf]
        %v460 = vld [vmem:[%s1 + $0x58] sm:$0xf]
        %v461 = vld [vmem:[%s1 + $0x5c] sm:$0xf]
        %v462 = vld [vmem:[%s1 + $0x60] sm:$0xf]
        %v463 = vld [vmem:[%s1 + $0x64] sm:$0xf]
        %v464 = vld [vmem:[%s1 + $0x68] sm:$0xf]
        %v465 = vld [vmem:[%s1 + $0x6c] sm:$0xf]
        %v466 = vld [vmem:[%s1 + $0x70] sm:$0xf]
        %v467 = vld [vmem:[%s1 + $0x74] sm:$0xf]
        %v468 = vld [vmem:[%s1 + $0x78] sm:$0xf]
        %v469 = vld [vmem:[%s1 + $0x7c] sm:$0xf]
        %v470 = vld [vmem:[%s1 + $0x80] sm:$0xf]
        %v471 = vld [vmem:[%s1 + $0x84] sm:$0xf]
        %v472 = vld [vmem:[%s1 + $0x88] sm:$0xf]
        %v473 = vld [vmem:[%s1 + $0x8c] sm:$0xf]
        %v474 = vld [vmem:[%s1 + $0x90] sm:$0xf]
        %v475 = vld [vmem:[%s1 + $0x94] sm:$0xf]
        %v476 = vld [vmem:[%s1 + $0x98] sm:$0xf]
        %v477 = vld [vmem:[%s1 + $0x9c] sm:$0xf]
        %v478 = vld [vmem:[%s1 + $0xa0] sm:$0xf]
        %v479 = vld [vmem:[%s1 + $0xa4] sm:$0xf]
        %v480 = vld [vmem:[%s1 + $0xa8] sm:$0xf]
        %v481 = vld [vmem:[%s1 + $0xac] sm:$0xf]
        %v482 = vld [vmem:[%s1 + $0xb0] sm:$0xf]
        %v483 = vld [vmem:[%s1 + $0xb4] sm:$0xf]
        %v484 = vld [vmem:[%s1 + $0xb8] sm:$0xf]
        %v485 = vld [vmem:[%s1 + $0xbc] sm:$0xf]
        %v486 = vld [vmem:[%s1 + $0xc0] sm:$0xf]
        %v487 = vld [vmem:[%s1 + $0xc4] sm:$0xf]
        %v488 = vld [vmem:[%s1 + $0xc8] sm:$0xf]
        %v489 = vld [vmem:[%s1 + $0xcc] sm:$0xf]
        %v490 = vld [vmem:[%s1 + $0xd0] sm:$0xf]
        %v491 = vld [vmem:[%s1 + $0xd4] sm:$0xf]
        %v492 = vld [vmem:[%s1 + $0xd8] sm:$0xf]
        %v493 = vld [vmem:[%s1 + $0xdc] sm:$0xf]
        %v494 = vld [vmem:[%s1 + $0xe0] sm:$0xf]
        %v495 = vld [vmem:[%s1 + $0xe4] sm:$0xf]
        %v496 = vld [vmem:[%s1 + $0xe8] sm:$0xf]
        %v497 = vld [vmem:[%s1 + $0xec] sm:$0xf]
        %v498 = vld [vmem:[%s1 + $0xf0] sm:$0xf]
        %v499 = vld [vmem:[%s1 + $0xf4] sm:$0xf]
        %v500 = vld [vmem:[%s1 + $0xf8] sm:$0xf]
        %v501 = vld [vmem:[%s1 + $0xfc] sm:$0xf]
        %v502 = vld [vmem:[%s1 + $0x100] sm:$0xf]
        %v503 = vld [vmem:[%s1 + $0x104] sm:$0xf]
        %v504 = vld [vmem:[%s1 + $0x108] sm:$0xf]
        %v505 = vld [vmem:[%s1 + $0x10c] sm:$0xf]
        %v506 = vld [vmem:[%s1 + $0x110] sm:$0xf]
        %v507 = vld [vmem:[%s1 + $0x114] sm:$0xf]
        %v508 = vld [vmem:[%s1 + $0x118] sm:$0xf]
        %v509 = vld [vmem:[%s1 + $0x11c] sm:$0xf]
        %v510 = vld [vmem:[%s1 + $0x120] sm:$0xf]
        %v511 = vld [vmem:[%s1 + $0x124] sm:$0xf]
        %v512 = vld [vmem:[%s1 + $0x128] sm:$0xf]
        %v513 = vld [vmem:[%s1 + $0x12c] sm:$0xf]
        %v514 = vld [vmem:[%s1 + $0x130] sm:$0xf]
        %v515 = vld [vmem:[%s1 + $0x134] sm:$0xf]
        %v516 = vld [vmem:[%s1 + $0x138] sm:$0xf]
        %v517 = vld [vmem:[%s1 + $0x13c] sm:$0xf]
        %v518 = vld [vmem:[%s1 + $0x140] sm:$0xf]
        %v519 = vld [vmem:[%s1 + $0x144] sm:$0xf]
        %v520 = vld [vmem:[%s1 + $0x148] sm:$0xf]
        %v521 = vld [vmem:[%s1 + $0x14c] sm:$0xf]
        %v522 = vld [vmem:[%s1 + $0x150] sm:$0xf]
        %v523 = vld [vmem:[%s1 + $0x154] sm:$0xf]
        %v524 = vld [vmem:[%s1 + $0x158] sm:$0xf]
        %v525 = vld [vmem:[%s1 + $0x15c] sm:$0xf]
        %v526 = vld [vmem:[%s1 + $0x160] sm:$0xf]
        %v527 = vld [vmem:[%s1 + $0x164] sm:$0xf]
        %v528 = vld [vmem:[%s1 + $0x168] sm:$0xf]
        %v529 = vld [vmem:[%s1 + $0x16c] sm:$0xf]
        %v530 = vld [vmem:[%s1 + $0x170] sm:$0xf]
        %v531 = vld [vmem:[%s1 + $0x174] sm:$0xf]
        %v532 = vld [vmem:[%s1 + $0x178] sm:$0xf]
        %v533 = vld [vmem:[%s1 + $0x17c] sm:$0xf]
        %v534 = vld [vmem:[%s1 + $0x180] sm:$0xf]
        %v535 = vld [vmem:[%s1 + $0x184] sm:$0xf]
        %v536 = vld [vmem:[#allocation5] sm:$0x1]
        %v538 = vlaneseq
        %v539 = vshrl.u32 %v538, 7
        %v540 = vsub.s32 0, %v539
        %v541 = vrot.slane %v536, %v540
        %v641 = vunpack.c.l.b16 %v438
        %v642 = vunpack.c.l.b16 %v439
        %v643 = vunpack.c.l.b16 %v440
        %v644 = vunpack.c.l.b16 %v441
        %v645 = vunpack.c.l.b16 %v442
        %v646 = vunpack.c.l.b16 %v443
        %v647 = vunpack.c.l.b16 %v444
        %v648 = vunpack.c.l.b16 %v445
        %v649 = vunpack.c.l.b16 %v446
        %v650 = vunpack.c.l.b16 %v447
        %v651 = vunpack.c.l.b16 %v448
        %v652 = vunpack.c.l.b16 %v449
        %v653 = vunpack.c.l.b16 %v450
        %v654 = vunpack.c.l.b16 %v451
        %v655 = vunpack.c.l.b16 %v452
        %v656 = vunpack.c.l.b16 %v453
        %v657 = vunpack.c.l.b16 %v454
        %v658 = vunpack.c.l.b16 %v455
        %v659 = vunpack.c.l.b16 %v456
        %v660 = vunpack.c.l.b16 %v457
        %v661 = vunpack.c.l.b16 %v458
        %v662 = vunpack.c.l.b16 %v459
        %v663 = vunpack.c.l.b16 %v460
        %v664 = vunpack.c.l.b16 %v461
        %v665 = vunpack.c.l.b16 %v462
        %v666 = vunpack.c.l.b16 %v463
        %v667 = vunpack.c.l.b16 %v464
        %v668 = vunpack.c.l.b16 %v465
        %v669 = vunpack.c.l.b16 %v466
        %v670 = vunpack.c.l.b16 %v467
        %v671 = vunpack.c.l.b16 %v468
        %v672 = vunpack.c.l.b16 %v469
        %v673 = vunpack.c.l.b16 %v470
        %v674 = vunpack.c.l.b16 %v471
        %v675 = vunpack.c.l.b16 %v472
        %v676 = vunpack.c.l.b16 %v473
        %v677 = vunpack.c.l.b16 %v474
        %v678 = vunpack.c.l.b16 %v475
        %v679 = vunpack.c.l.b16 %v476
        %v680 = vunpack.c.l.b16 %v477
        %v681 = vunpack.c.l.b16 %v478
        %v682 = vunpack.c.l.b16 %v479
        %v683 = vunpack.c.l.b16 %v480
        %v684 = vunpack.c.l.b16 %v481
        %v685 = vunpack.c.l.b16 %v482
        %v686 = vunpack.c.l.b16 %v483
        %v687 = vunpack.c.l.b16 %v484
        %v688 = vunpack.c.l.b16 %v485
        %v689 = vunpack.c.l.b16 %v486
        %v690 = vunpack.c.l.b16 %v487
        %v691 = vunpack.c.l.b16 %v488
        %v692 = vunpack.c.l.b16 %v489
        %v693 = vunpack.c.l.b16 %v490
        %v694 = vunpack.c.l.b16 %v491
        %v695 = vunpack.c.l.b16 %v492
        %v696 = vunpack.c.l.b16 %v493
        %v697 = vunpack.c.l.b16 %v494
        %v698 = vunpack.c.l.b16 %v495
        %v699 = vunpack.c.l.b16 %v496
        %v700 = vunpack.c.l.b16 %v497
        %v701 = vunpack.c.l.b16 %v498
        %v702 = vunpack.c.l.b16 %v499
        %v703 = vunpack.c.l.b16 %v500
        %v704 = vunpack.c.l.b16 %v501
        %v705 = vunpack.c.l.b16 %v502
        %v706 = vunpack.c.l.b16 %v503
        %v707 = vunpack.c.l.b16 %v504
        %v708 = vunpack.c.l.b16 %v505
        %v709 = vunpack.c.l.b16 %v506
        %v710 = vunpack.c.l.b16 %v507
        %v711 = vunpack.c.l.b16 %v508
        %v712 = vunpack.c.l.b16 %v509
        %v713 = vunpack.c.l.b16 %v510
        %v714 = vunpack.c.l.b16 %v511
        %v715 = vunpack.c.l.b16 %v512
        %v716 = vunpack.c.l.b16 %v513
        %v717 = vunpack.c.l.b16 %v514
        %v718 = vunpack.c.l.b16 %v515
        %v719 = vunpack.c.l.b16 %v516
        %v720 = vunpack.c.l.b16 %v517
        %v721 = vunpack.c.l.b16 %v518
        %v722 = vunpack.c.l.b16 %v519
        %v723 = vunpack.c.l.b16 %v520
        %v724 = vunpack.c.l.b16 %v521
        %v725 = vunpack.c.l.b16 %v522
        %v726 = vunpack.c.l.b16 %v523
        %v727 = vunpack.c.l.b16 %v524
        %v728 = vunpack.c.l.b16 %v525
        %v729 = vunpack.c.l.b16 %v526
        %v730 = vunpack.c.l.b16 %v527
        %v731 = vunpack.c.l.b16 %v528
        %v732 = vunpack.c.l.b16 %v529
        %v733 = vunpack.c.l.b16 %v530
        %v734 = vunpack.c.l.b16 %v531
        %v735 = vunpack.c.l.b16 %v532
        %v736 = vunpack.c.l.b16 %v533
        %v737 = vunpack.c.l.b16 %v534
        %v738 = vunpack.c.l.b16 %v535
        %v739 = vpack.c.b16 %v642, %v641
        %v740 = vpack.c.b16 %v644, %v643
        %v741 = vpack.c.b16 %v646, %v645
        %v742 = vpack.c.b16 %v648, %v647
        %v743 = vpack.c.b16 %v650, %v649
        %v744 = vpack.c.b16 %v652, %v651
        %v745 = vpack.c.b16 %v654, %v653
        %v746 = vpack.c.b16 %v656, %v655
        %v747 = vpack.c.b16 %v658, %v657
        %v748 = vpack.c.b16 %v660, %v659
        %v749 = vpack.c.b16 %v662, %v661
        %v750 = vpack.c.b16 %v664, %v663
        %v751 = vpack.c.b16 %v666, %v665
        %v752 = vpack.c.b16 %v668, %v667
        %v753 = vpack.c.b16 %v670, %v669
        %v754 = vpack.c.b16 %v672, %v671
        %v755 = vpack.c.b16 %v674, %v673
        %v756 = vpack.c.b16 %v676, %v675
        %v757 = vpack.c.b16 %v678, %v677
        %v758 = vpack.c.b16 %v680, %v679
        %v759 = vpack.c.b16 %v682, %v681
        %v760 = vpack.c.b16 %v684, %v683
        %v761 = vpack.c.b16 %v686, %v685
        %v762 = vpack.c.b16 %v688, %v687
        %v763 = vpack.c.b16 %v690, %v689
        %v764 = vpack.c.b16 %v692, %v691
        %v765 = vpack.c.b16 %v694, %v693
        %v766 = vpack.c.b16 %v696, %v695
        %v767 = vpack.c.b16 %v698, %v697
        %v768 = vpack.c.b16 %v700, %v699
        %v769 = vpack.c.b16 %v702, %v701
        %v770 = vpack.c.b16 %v704, %v703
        %v771 = vpack.c.b16 %v706, %v705
        %v772 = vpack.c.b16 %v708, %v707
        %v773 = vpack.c.b16 %v710, %v709
        %v774 = vpack.c.b16 %v712, %v711
        %v775 = vpack.c.b16 %v714, %v713
        %v776 = vpack.c.b16 %v716, %v715
        %v777 = vpack.c.b16 %v718, %v717
        %v778 = vpack.c.b16 %v720, %v719
        %v779 = vpack.c.b16 %v722, %v721
        %v780 = vpack.c.b16 %v724, %v723
        %v781 = vpack.c.b16 %v726, %v725
        %v782 = vpack.c.b16 %v728, %v727
        %v783 = vpack.c.b16 %v730, %v729
        %v784 = vpack.c.b16 %v732, %v731
        %v785 = vpack.c.b16 %v734, %v733
        %v786 = vpack.c.b16 %v736, %v735
        %v787 = vpack.c.b16 %v738, %v737
        %vm837 = vcmask 130048
        %v839 = vsel %vm837, %v388, 0
        %v842 = vsel %vm837, %v395, 0
        %v845 = vsel %vm837, %v402, 0
        %v848 = vsel %vm837, %v409, 0
        %v851 = vsel %vm837, %v416, 0
        %v854 = vsel %vm837, %v423, 0
        %v857 = vsel %vm837, %v430, 0
        %v860 = vsel %vm837, %v437, 0
        %862 = vmatprep.subr.bf16.mxu0 0
        %863 = vmatpush1.bf16.msra.mxu0 %v739
        %864 = vmatprep.subr.bf16.mxu0 0
        %865 = vmatpush1.bf16.msra.mxu0 %v740
        %866 = vmatprep.subr.bf16.mxu0 0
        %867 = vmatpush1.bf16.msra.mxu0 %v741
        %868 = vmatprep.subr.bf16.mxu0 0
        %869 = vmatpush1.bf16.msra.mxu0 %v742
        %870 = vmatprep.subr.bf16.mxu0 0
        %871 = vmatpush1.bf16.msra.mxu0 %v743
        %872 = vmatprep.subr.bf16.mxu0 0
        %873 = vmatpush1.bf16.msra.mxu0 %v744
        %874 = vmatprep.subr.bf16.mxu0 0
        %875 = vmatpush1.bf16.msra.mxu0 %v745
        %876 = vmatprep.subr.bf16.mxu0 0
        %877 = vmatpush1.bf16.msra.mxu0 %v746
        %878 = vmatprep.subr.bf16.mxu0 0
        %879 = vmatpush1.bf16.msra.mxu0 %v747
        %880 = vmatprep.subr.bf16.mxu0 0
        %881 = vmatpush1.bf16.msra.mxu0 %v748
        %882 = vmatprep.subr.bf16.mxu0 0
        %883 = vmatpush1.bf16.msra.mxu0 %v749
        %884 = vmatprep.subr.bf16.mxu0 0
        %885 = vmatpush1.bf16.msra.mxu0 %v750
        %886 = vmatprep.subr.bf16.mxu0 0
        %887 = vmatpush1.bf16.msra.mxu0 %v751
        %888 = vmatprep.subr.bf16.mxu0 0
        %889 = vmatpush1.bf16.msra.mxu0 %v752
        %890 = vmatprep.subr.bf16.mxu0 0
        %891 = vmatpush1.bf16.msra.mxu0 %v753
        %892 = vmatprep.subr.bf16.mxu0 0
        %893 = vmatpush1.bf16.msra.mxu0 %v754
        %894 = vmatprep.mubr.bf16.mxu0 %v383
        %895 = vmatmul.mubr.bf16.gmra.mrb[0].mxu0 %v382
        %v896 = vpop.f32.mrb[0].mxu0
        %v897 = vadd.f32 %v541, %v896
        %v898 = vpop.f32.mrb[0].mxu0
        %v899 = vpop.f32.mrb[0].mxu0
        %v900 = vadd.f32 %v541, %v899
        %v901 = vpop.f32.mrb[0].mxu0
        %902 = vmatprep.mubr.bf16.mxu0 %v390
        %903 = vmatmul.mubr.bf16.gmra.mrb[0].mxu0 %v389
        %v904 = vpop.f32.mrb[0].mxu0
        %v905 = vadd.f32 %v541, %v904
        %v906 = vpop.f32.mrb[0].mxu0
        %v907 = vpop.f32.mrb[0].mxu0
        %v908 = vadd.f32 %v541, %v907
        %v909 = vpop.f32.mrb[0].mxu0
        %910 = vmatprep.mubr.bf16.mxu0 %v397
        %911 = vmatmul.mubr.bf16.gmra.mrb[0].mxu0 %v396
        %v912 = vpop.f32.mrb[0].mxu0
        %v913 = vadd.f32 %v541, %v912
        %v914 = vpop.f32.mrb[0].mxu0
        %v915 = vpop.f32.mrb[0].mxu0
        %v916 = vadd.f32 %v541, %v915
        %v917 = vpop.f32.mrb[0].mxu0
        %918 = vmatprep.mubr.bf16.mxu0 %v404
        %919 = vmatmul.mubr.bf16.gmra.mrb[0].mxu0 %v403
        %v920 = vpop.f32.mrb[0].mxu0
        %v921 = vadd.f32 %v541, %v920
        %v922 = vpop.f32.mrb[0].mxu0
        %v923 = vpop.f32.mrb[0].mxu0
        %v924 = vadd.f32 %v541, %v923
        %v925 = vpop.f32.mrb[0].mxu0
        %926 = vmatprep.mubr.bf16.mxu0 %v411
        %927 = vmatmul.mubr.bf16.gmra.mrb[0].mxu0 %v410
        %v928 = vpop.f32.mrb[0].mxu0
        %v929 = vadd.f32 %v541, %v928
        %v930 = vpop.f32.mrb[0].mxu0
        %v931 = vpop.f32.mrb[0].mxu0
        %v932 = vadd.f32 %v541, %v931
        %v933 = vpop.f32.mrb[0].mxu0
        %934 = vmatprep.mubr.bf16.mxu0 %v418
        %935 = vmatmul.mubr.bf16.gmra.mrb[0].mxu0 %v417
        %v936 = vpop.f32.mrb[0].mxu0
        %v937 = vadd.f32 %v541, %v936
        %v938 = vpop.f32.mrb[0].mxu0
        %v939 = vpop.f32.mrb[0].mxu0
        %v940 = vadd.f32 %v541, %v939
        %v941 = vpop.f32.mrb[0].mxu0
        %942 = vmatprep.mubr.bf16.mxu0 %v425
        %943 = vmatmul.mubr.bf16.gmra.mrb[0].mxu0 %v424
        %v944 = vpop.f32.mrb[0].mxu0
        %v945 = vadd.f32 %v541, %v944
        %v946 = vpop.f32.mrb[0].mxu0
        %v947 = vpop.f32.mrb[0].mxu0
        %v948 = vadd.f32 %v541, %v947
        %v949 = vpop.f32.mrb[0].mxu0
        %950 = vmatprep.mubr.bf16.mxu0 %v432
        %951 = vmatmul.mubr.bf16.gmra.mrb[0].mxu0 %v431
        %v952 = vpop.f32.mrb[0].mxu0
        %v953 = vadd.f32 %v541, %v952
        %v954 = vpop.f32.mrb[0].mxu0
        %v955 = vpop.f32.mrb[0].mxu0
        %v956 = vadd.f32 %v541, %v955
        %v957 = vpop.f32.mrb[0].mxu0
        %958 = vdwg.mxu0
        %959 = vmatprep.subr.bf16.mxu0 0
        %960 = vmatpush1.bf16.msra.mxu0 %v755
        %961 = vmatprep.subr.bf16.mxu0 0
        %962 = vmatpush1.bf16.msra.mxu0 %v756
        %963 = vmatprep.subr.bf16.mxu0 0
        %964 = vmatpush1.bf16.msra.mxu0 %v757
        %965 = vmatprep.subr.bf16.mxu0 0
        %966 = vmatpush1.bf16.msra.mxu0 %v758
        %967 = vmatprep.subr.bf16.mxu0 0
        %968 = vmatpush1.bf16.msra.mxu0 %v759
        %969 = vmatprep.subr.bf16.mxu0 0
        %970 = vmatpush1.bf16.msra.mxu0 %v760
        %971 = vmatprep.subr.bf16.mxu0 0
        %972 = vmatpush1.bf16.msra.mxu0 %v761
        %973 = vmatprep.subr.bf16.mxu0 0
        %974 = vmatpush1.bf16.msra.mxu0 %v762
        %975 = vmatprep.subr.bf16.mxu0 0
        %976 = vmatpush1.bf16.msra.mxu0 %v763
        %977 = vmatprep.subr.bf16.mxu0 0
        %978 = vmatpush1.bf16.msra.mxu0 %v764
        %979 = vmatprep.subr.bf16.mxu0 0
        %980 = vmatpush1.bf16.msra.mxu0 %v765
        %981 = vmatprep.subr.bf16.mxu0 0
        %982 = vmatpush1.bf16.msra.mxu0 %v766
        %983 = vmatprep.subr.bf16.mxu0 0
        %984 = vmatpush1.bf16.msra.mxu0 %v767
        %985 = vmatprep.subr.bf16.mxu0 0
        %986 = vmatpush1.bf16.msra.mxu0 %v768
        %987 = vmatprep.subr.bf16.mxu0 0
        %988 = vmatpush1.bf16.msra.mxu0 %v769
        %989 = vmatprep.subr.bf16.mxu0 0
        %990 = vmatpush1.bf16.msra.mxu0 %v770
        %991 = vmatprep.mubr.bf16.mxu0 %v385
        %992 = vmatmul.mubr.bf16.gmra.mrb[0].mxu0 %v384
        %v993 = vpop.f32.mrb[0].mxu0
        %v994 = vadd.f32 %v897, %v993
        %v995 = vpop.f32.mrb[0].mxu0
        %v996 = vpop.f32.mrb[0].mxu0
        %v997 = vadd.f32 %v900, %v996
        %v998 = vpop.f32.mrb[0].mxu0
        %999 = vmatprep.mubr.bf16.mxu0 %v392
        %1000 = vmatmul.mubr.bf16.gmra.mrb[0].mxu0 %v391
        %v1001 = vpop.f32.mrb[0].mxu0
        %v1002 = vadd.f32 %v905, %v1001
        %v1003 = vpop.f32.mrb[0].mxu0
        %v1004 = vpop.f32.mrb[0].mxu0
        %v1005 = vadd.f32 %v908, %v1004
        %v1006 = vpop.f32.mrb[0].mxu0
        %1007 = vmatprep.mubr.bf16.mxu0 %v399
        %1008 = vmatmul.mubr.bf16.gmra.mrb[0].mxu0 %v398
        %v1009 = vpop.f32.mrb[0].mxu0
        %v1010 = vadd.f32 %v913, %v1009
        %v1011 = vpop.f32.mrb[0].mxu0
        %v1012 = vpop.f32.mrb[0].mxu0
        %v1013 = vadd.f32 %v916, %v1012
        %v1014 = vpop.f32.mrb[0].mxu0
        %1015 = vmatprep.mubr.bf16.mxu0 %v406
        %1016 = vmatmul.mubr.bf16.gmra.mrb[0].mxu0 %v405
        %v1017 = vpop.f32.mrb[0].mxu0
        %v1018 = vadd.f32 %v921, %v1017
        %v1019 = vpop.f32.mrb[0].mxu0
        %v1020 = vpop.f32.mrb[0].mxu0
        %v1021 = vadd.f32 %v924, %v1020
        %v1022 = vpop.f32.mrb[0].mxu0
        %1023 = vmatprep.mubr.bf16.mxu0 %v413
        %1024 = vmatmul.mubr.bf16.gmra.mrb[0].mxu0 %v412
        %v1025 = vpop.f32.mrb[0].mxu0
        %v1026 = vadd.f32 %v929, %v1025
        %v1027 = vpop.f32.mrb[0].mxu0
        %v1028 = vpop.f32.mrb[0].mxu0
        %v1029 = vadd.f32 %v932, %v1028
        %v1030 = vpop.f32.mrb[0].mxu0
        %1031 = vmatprep.mubr.bf16.mxu0 %v420
        %1032 = vmatmul.mubr.bf16.gmra.mrb[0].mxu0 %v419
        %v1033 = vpop.f32.mrb[0].mxu0
        %v1034 = vadd.f32 %v937, %v1033
        %v1035 = vpop.f32.mrb[0].mxu0
        %v1036 = vpop.f32.mrb[0].mxu0
        %v1037 = vadd.f32 %v940, %v1036
        %v1038 = vpop.f32.mrb[0].mxu0
        %1039 = vmatprep.mubr.bf16.mxu0 %v427
        %1040 = vmatmul.mubr.bf16.gmra.mrb[0].mxu0 %v426
        %v1041 = vpop.f32.mrb[0].mxu0
        %v1042 = vadd.f32 %v945, %v1041
        %v1043 = vpop.f32.mrb[0].mxu0
        %v1044 = vpop.f32.mrb[0].mxu0
        %v1045 = vadd.f32 %v948, %v1044
        %v1046 = vpop.f32.mrb[0].mxu0
        %1047 = vmatprep.mubr.bf16.mxu0 %v434
        %1048 = vmatmul.mubr.bf16.gmra.mrb[0].mxu0 %v433
        %v1049 = vpop.f32.mrb[0].mxu0
        %v1050 = vadd.f32 %v953, %v1049
        %v1051 = vpop.f32.mrb[0].mxu0
        %v1052 = vpop.f32.mrb[0].mxu0
        %v1053 = vadd.f32 %v956, %v1052
        %v1054 = vpop.f32.mrb[0].mxu0
        %1055 = vdwg.mxu0
        %1056 = vmatprep.subr.bf16.mxu0 0
        %1057 = vmatpush1.bf16.msra.mxu0 %v771
        %1058 = vmatprep.subr.bf16.mxu0 0
        %1059 = vmatpush1.bf16.msra.mxu0 %v772
        %1060 = vmatprep.subr.bf16.mxu0 0
        %1061 = vmatpush1.bf16.msra.mxu0 %v773
        %1062 = vmatprep.subr.bf16.mxu0 0
        %1063 = vmatpush1.bf16.msra.mxu0 %v774
        %1064 = vmatprep.subr.bf16.mxu0 0
        %1065 = vmatpush1.bf16.msra.mxu0 %v775
        %1066 = vmatprep.subr.bf16.mxu0 0
        %1067 = vmatpush1.bf16.msra.mxu0 %v776
        %1068 = vmatprep.subr.bf16.mxu0 0
        %1069 = vmatpush1.bf16.msra.mxu0 %v777
        %1070 = vmatprep.subr.bf16.mxu0 0
        %1071 = vmatpush1.bf16.msra.mxu0 %v778
        %1072 = vmatprep.subr.bf16.mxu0 0
        %1073 = vmatpush1.bf16.msra.mxu0 %v779
        %1074 = vmatprep.subr.bf16.mxu0 0
        %1075 = vmatpush1.bf16.msra.mxu0 %v780
        %1076 = vmatprep.subr.bf16.mxu0 0
        %1077 = vmatpush1.bf16.msra.mxu0 %v781
        %1078 = vmatprep.subr.bf16.mxu0 0
        %1079 = vmatpush1.bf16.msra.mxu0 %v782
        %1080 = vmatprep.subr.bf16.mxu0 0
        %1081 = vmatpush1.bf16.msra.mxu0 %v783
        %1082 = vmatprep.subr.bf16.mxu0 0
        %1083 = vmatpush1.bf16.msra.mxu0 %v784
        %1084 = vmatprep.subr.bf16.mxu0 0
        %1085 = vmatpush1.bf16.msra.mxu0 %v785
        %1086 = vmatprep.subr.bf16.mxu0 0
        %1087 = vmatpush1.bf16.msra.mxu0 %v786
        %1088 = vmatprep.mubr.bf16.mxu0 %v387
        %1089 = vmatmul.mubr.bf16.gmra.mrb[0].mxu0 %v386
        %v1090 = vpop.f32.mrb[0].mxu0
        %v1091 = vadd.f32 %v994, %v1090
        %v1092 = vpop.f32.mrb[0].mxu0
        %v1093 = vpop.f32.mrb[0].mxu0
        %v1094 = vadd.f32 %v997, %v1093
        %v1095 = vpop.f32.mrb[0].mxu0
        %1096 = vmatprep.mubr.bf16.mxu0 %v394
        %1097 = vmatmul.mubr.bf16.gmra.mrb[0].mxu0 %v393
        %v1098 = vpop.f32.mrb[0].mxu0
        %v1099 = vadd.f32 %v1002, %v1098
        %v1100 = vpop.f32.mrb[0].mxu0
        %v1101 = vpop.f32.mrb[0].mxu0
        %v1102 = vadd.f32 %v1005, %v1101
        %v1103 = vpop.f32.mrb[0].mxu0
        %1104 = vmatprep.mubr.bf16.mxu0 %v401
        %1105 = vmatmul.mubr.bf16.gmra.mrb[0].mxu0 %v400
        %v1106 = vpop.f32.mrb[0].mxu0
        %v1107 = vadd.f32 %v1010, %v1106
        %v1108 = vpop.f32.mrb[0].mxu0
        %v1109 = vpop.f32.mrb[0].mxu0
        %v1110 = vadd.f32 %v1013, %v1109
        %v1111 = vpop.f32.mrb[0].mxu0
        %1112 = vmatprep.mubr.bf16.mxu0 %v408
        %1113 = vmatmul.mubr.bf16.gmra.mrb[0].mxu0 %v407
        %v1114 = vpop.f32.mrb[0].mxu0
        %v1115 = vadd.f32 %v1018, %v1114
        %v1116 = vpop.f32.mrb[0].mxu0
        %v1117 = vpop.f32.mrb[0].mxu0
        %v1118 = vadd.f32 %v1021, %v1117
        %v1119 = vpop.f32.mrb[0].mxu0
        %1120 = vmatprep.mubr.bf16.mxu0 %v415
        %1121 = vmatmul.mubr.bf16.gmra.mrb[0].mxu0 %v414
        %v1122 = vpop.f32.mrb[0].mxu0
        %v1123 = vadd.f32 %v1026, %v1122
        %v1124 = vpop.f32.mrb[0].mxu0
        %v1125 = vpop.f32.mrb[0].mxu0
        %v1126 = vadd.f32 %v1029, %v1125
        %v1127 = vpop.f32.mrb[0].mxu0
        %1128 = vmatprep.mubr.bf16.mxu0 %v422
        %1129 = vmatmul.mubr.bf16.gmra.mrb[0].mxu0 %v421
        %v1130 = vpop.f32.mrb[0].mxu0
        %v1131 = vadd.f32 %v1034, %v1130
        %v1132 = vpop.f32.mrb[0].mxu0
        %v1133 = vpop.f32.mrb[0].mxu0
        %v1134 = vadd.f32 %v1037, %v1133
        %v1135 = vpop.f32.mrb[0].mxu0
        %1136 = vmatprep.mubr.bf16.mxu0 %v429
        %1137 = vmatmul.mubr.bf16.gmra.mrb[0].mxu0 %v428
        %v1138 = vpop.f32.mrb[0].mxu0
        %v1139 = vadd.f32 %v1042, %v1138
        %v1140 = vpop.f32.mrb[0].mxu0
        %v1141 = vpop.f32.mrb[0].mxu0
        %v1142 = vadd.f32 %v1045, %v1141
        %v1143 = vpop.f32.mrb[0].mxu0
        %1144 = vmatprep.mubr.bf16.mxu0 %v436
        %1145 = vmatmul.mubr.bf16.gmra.mrb[0].mxu0 %v435
        %v1146 = vpop.f32.mrb[0].mxu0
        %v1147 = vadd.f32 %v1050, %v1146
        %v1148 = vpop.f32.mrb[0].mxu0
        %v1149 = vpop.f32.mrb[0].mxu0
        %v1150 = vadd.f32 %v1053, %v1149
        %v1151 = vpop.f32.mrb[0].mxu0
        %1152 = vdwg.mxu0
        %1153 = vmatprep.subr.bf16.mxu0 0
        %1154 = vmatpush1.bf16.msra.mxu0 %v787
        %1155 = vmatprep.subr.bf16.mxu0 0
        %1156 = vmatpush1.bf16.msra.mxu0 0
        %1157 = vmatprep.subr.bf16.mxu0 0
        %1158 = vmatpush1.bf16.msra.mxu0 0
        %1159 = vmatprep.subr.bf16.mxu0 0
        %1160 = vmatpush1.bf16.msra.mxu0 0
        %1161 = vmatprep.subr.bf16.mxu0 0
        %1162 = vmatpush1.bf16.msra.mxu0 0
        %1163 = vmatprep.subr.bf16.mxu0 0
        %1164 = vmatpush1.bf16.msra.mxu0 0
        %1165 = vmatprep.subr.bf16.mxu0 0
        %1166 = vmatpush1.bf16.msra.mxu0 0
        %1167 = vmatprep.subr.bf16.mxu0 0
        %1168 = vmatpush1.bf16.msra.mxu0 0
        %1169 = vmatprep.subr.bf16.mxu0 0
        %1170 = vmatpush1.bf16.msra.mxu0 0
        %1171 = vmatprep.subr.bf16.mxu0 0
        %1172 = vmatpush1.bf16.msra.mxu0 0
        %1173 = vmatprep.subr.bf16.mxu0 0
        %1174 = vmatpush1.bf16.msra.mxu0 0
        %1175 = vmatprep.subr.bf16.mxu0 0
        %1176 = vmatpush1.bf16.msra.mxu0 0
        %1177 = vmatprep.subr.bf16.mxu0 0
        %1178 = vmatpush1.bf16.msra.mxu0 0
        %1179 = vmatprep.subr.bf16.mxu0 0
        %1180 = vmatpush1.bf16.msra.mxu0 0
        %1181 = vmatprep.subr.bf16.mxu0 0
        %1182 = vmatpush1.bf16.msra.mxu0 0
        %1183 = vmatprep.subr.bf16.mxu0 0
        %1184 = vmatpush1.bf16.msra.mxu0 0
        %1185 = vmatprep.mubr.bf16.mxu0 0
        %1186 = vmatmul.mubr.bf16.gmra.mrb[0].mxu0 %v839
        %v1187 = vpop.f32.mrb[0].mxu0
        %v1188 = vadd.f32 %v1091, %v1187
        %v1189 = vpop.f32.mrb[0].mxu0
        %v1190 = vpop.f32.mrb[0].mxu0
        %v1191 = vadd.f32 %v1094, %v1190
        %v1192 = vpop.f32.mrb[0].mxu0
        %1193 = vmatprep.mubr.bf16.mxu0 0
        %1194 = vmatmul.mubr.bf16.gmra.mrb[0].mxu0 %v842
        %v1195 = vpop.f32.mrb[0].mxu0
        %v1196 = vadd.f32 %v1099, %v1195
        %v1197 = vpop.f32.mrb[0].mxu0
        %v1198 = vpop.f32.mrb[0].mxu0
        %v1199 = vadd.f32 %v1102, %v1198
        %v1200 = vpop.f32.mrb[0].mxu0
        %1201 = vmatprep.mubr.bf16.mxu0 0
        %1202 = vmatmul.mubr.bf16.gmra.mrb[0].mxu0 %v845
        %v1203 = vpop.f32.mrb[0].mxu0
        %v1204 = vadd.f32 %v1107, %v1203
        %v1205 = vpop.f32.mrb[0].mxu0
        %v1206 = vpop.f32.mrb[0].mxu0
        %v1207 = vadd.f32 %v1110, %v1206
        %v1208 = vpop.f32.mrb[0].mxu0
        %1209 = vmatprep.mubr.bf16.mxu0 0
        %1210 = vmatmul.mubr.bf16.gmra.mrb[0].mxu0 %v848
        %v1211 = vpop.f32.mrb[0].mxu0
        %v1212 = vadd.f32 %v1115, %v1211
        %v1213 = vpop.f32.mrb[0].mxu0
        %v1214 = vpop.f32.mrb[0].mxu0
        %v1215 = vadd.f32 %v1118, %v1214
        %v1216 = vpop.f32.mrb[0].mxu0
        %1217 = vmatprep.mubr.bf16.mxu0 0
        %1218 = vmatmul.mubr.bf16.gmra.mrb[0].mxu0 %v851
        %v1219 = vpop.f32.mrb[0].mxu0
        %v1220 = vadd.f32 %v1123, %v1219
        %v1221 = vpop.f32.mrb[0].mxu0
        %v1222 = vpop.f32.mrb[0].mxu0
        %v1223 = vadd.f32 %v1126, %v1222
        %v1224 = vpop.f32.mrb[0].mxu0
        %1225 = vmatprep.mubr.bf16.mxu0 0
        %1226 = vmatmul.mubr.bf16.gmra.mrb[0].mxu0 %v854
        %v1227 = vpop.f32.mrb[0].mxu0
        %v1228 = vadd.f32 %v1131, %v1227
        %v1229 = vpop.f32.mrb[0].mxu0
        %v1230 = vpop.f32.mrb[0].mxu0
        %v1231 = vadd.f32 %v1134, %v1230
        %v1232 = vpop.f32.mrb[0].mxu0
        %1233 = vmatprep.mubr.bf16.mxu0 0
        %1234 = vmatmul.mubr.bf16.gmra.mrb[0].mxu0 %v857
        %v1235 = vpop.f32.mrb[0].mxu0
        %v1236 = vadd.f32 %v1139, %v1235
        %v1237 = vpop.f32.mrb[0].mxu0
        %v1238 = vpop.f32.mrb[0].mxu0
        %v1239 = vadd.f32 %v1142, %v1238
        %v1240 = vpop.f32.mrb[0].mxu0
        %1241 = vmatprep.mubr.bf16.mxu0 0
        %1242 = vmatmul.mubr.bf16.gmra.mrb[0].mxu0 %v860
        %v1243 = vpop.f32.mrb[0].mxu0
        %v1244 = vadd.f32 %v1147, %v1243
        %v1245 = vpop.f32.mrb[0].mxu0
        %v1246 = vpop.f32.mrb[0].mxu0
        %v1247 = vadd.f32 %v1150, %v1246
        %v1248 = vpop.f32.mrb[0].mxu0
        %1249 = vdwg.mxu0
        %vm1250 = vcmp.gt.f32.partialorder %v1188, 0.0
        %vm1251 = vcmp.gt.f32.partialorder %v1191, 0.0
        %vm1252 = vcmp.gt.f32.partialorder %v1196, 0.0
        %vm1253 = vcmp.gt.f32.partialorder %v1199, 0.0
        %vm1254 = vcmp.gt.f32.partialorder %v1204, 0.0
        %vm1255 = vcmp.gt.f32.partialorder %v1207, 0.0
        %vm1256 = vcmp.gt.f32.partialorder %v1212, 0.0
        %vm1257 = vcmp.gt.f32.partialorder %v1215, 0.0
        %vm1258 = vcmp.gt.f32.partialorder %v1220, 0.0
        %vm1259 = vcmp.gt.f32.partialorder %v1223, 0.0
        %vm1260 = vcmp.gt.f32.partialorder %v1228, 0.0
        %vm1261 = vcmp.gt.f32.partialorder %v1231, 0.0
        %vm1262 = vcmp.gt.f32.partialorder %v1236, 0.0
        %vm1263 = vcmp.gt.f32.partialorder %v1239, 0.0
        %vm1264 = vcmp.gt.f32.partialorder %v1244, 0.0
        %vm1265 = vcmp.gt.f32.partialorder %v1247, 0.0
        %v1266 = vmul.f32 %v1188, 0.1
        %v1267 = vmul.f32 %v1191, 0.1
        %v1268 = vmul.f32 %v1196, 0.1
        %v1269 = vmul.f32 %v1199, 0.1
        %v1270 = vmul.f32 %v1204, 0.1
        %v1271 = vmul.f32 %v1207, 0.1
        %v1272 = vmul.f32 %v1212, 0.1
        %v1273 = vmul.f32 %v1215, 0.1
        %v1274 = vmul.f32 %v1220, 0.1
        %v1275 = vmul.f32 %v1223, 0.1
        %v1276 = vmul.f32 %v1228, 0.1
        %v1277 = vmul.f32 %v1231, 0.1
        %v1278 = vmul.f32 %v1236, 0.1
        %v1279 = vmul.f32 %v1239, 0.1
        %v1280 = vmul.f32 %v1244, 0.1
        %v1281 = vmul.f32 %v1247, 0.1
        %v1282 = vsel %vm1250, %v1188, %v1266
        %v1283 = vsel %vm1251, %v1191, %v1267
        %v1284 = vsel %vm1252, %v1196, %v1268
        %v1285 = vsel %vm1253, %v1199, %v1269
        %v1286 = vsel %vm1254, %v1204, %v1270
        %v1287 = vsel %vm1255, %v1207, %v1271
        %v1288 = vsel %vm1256, %v1212, %v1272
        %v1289 = vsel %vm1257, %v1215, %v1273
        %v1290 = vsel %vm1258, %v1220, %v1274
        %v1291 = vsel %vm1259, %v1223, %v1275
        %v1292 = vsel %vm1260, %v1228, %v1276
        %v1293 = vsel %vm1261, %v1231, %v1277
        %v1294 = vsel %vm1262, %v1236, %v1278
        %v1295 = vsel %vm1263, %v1239, %v1279
        %v1296 = vsel %vm1264, %v1244, %v1280
        %v1297 = vsel %vm1265, %v1247, %v1281
        %v1298 = vld [vmem:[%s3] sm:$0x1]
        %v1299 = vpack.c.bf16 %v1283, %v1282
        %v1300 = vpack.c.bf16 %v1285, %v1284
        %v1301 = vpack.c.bf16 %v1287, %v1286
        %v1302 = vpack.c.bf16 %v1289, %v1288
        %v1303 = vpack.c.bf16 %v1291, %v1290
        %v1304 = vpack.c.bf16 %v1293, %v1292
        %v1305 = vpack.c.bf16 %v1295, %v1294
        %v1306 = vpack.c.bf16 %v1297, %v1296
        %s1307 = sld [smem:[#allocation2]]
        %v1308 = vstv %s1307
        %1309 = vmatprep.subr.bf16.mxu0 0
        %1310 = vmatpush1.bf16.xpose.msra.mxu0 %v1299
        %1311 = vmatprep.subr.bf16.mxu0 0
        %1312 = vmatpush1.bf16.xpose.msra.mxu0 %v1300
        %1313 = vmatprep.subr.bf16.mxu0 0
        %1314 = vmatpush1.bf16.xpose.msra.mxu0 %v1301
        %1315 = vmatprep.subr.bf16.mxu0 0
        %1316 = vmatpush1.bf16.xpose.msra.mxu0 %v1302
        %1317 = vmatprep.subr.bf16.mxu0 0
        %1318 = vmatpush1.bf16.xpose.msra.mxu0 %v1303
        %1319 = vmatprep.subr.bf16.mxu0 0
        %1320 = vmatpush1.bf16.xpose.msra.mxu0 %v1304
        %1321 = vmatprep.subr.bf16.mxu0 0
        %1322 = vmatpush1.bf16.xpose.msra.mxu0 %v1305
        %1323 = vmatprep.subr.bf16.mxu0 0
        %1324 = vmatpush1.bf16.xpose.msra.mxu0 %v1306
        %1325 = vmatprep.subr.bf16.mxu0 0
        %1326 = vmatpush1.bf16.xpose.msra.mxu0 0
        %1327 = vmatprep.subr.bf16.mxu0 0
        %1328 = vmatpush1.bf16.xpose.msra.mxu0 0
        %1329 = vmatprep.subr.bf16.mxu0 0
        %1330 = vmatpush1.bf16.xpose.msra.mxu0 0
        %1331 = vmatprep.subr.bf16.mxu0 0
        %1332 = vmatpush1.bf16.xpose.msra.mxu0 0
        %1333 = vmatprep.subr.bf16.mxu0 0
        %1334 = vmatpush1.bf16.xpose.msra.mxu0 0
        %1335 = vmatprep.subr.bf16.mxu0 0
        %1336 = vmatpush1.bf16.xpose.msra.mxu0 0
        %1337 = vmatprep.subr.bf16.mxu0 0
        %1338 = vmatpush1.bf16.xpose.msra.mxu0 0
        %1339 = vmatprep.subr.bf16.mxu0 0
        %1340 = vmatpush1.bf16.xpose.msra.mxu0 0
        %1341 = vmatprep.mubr.bf16.mxu0 0
        %1342 = vmatmul.mubr.bf16.gmra.mrb[0].mxu0 %v1298
        %v1343 = vpop.f32.mrb[0].mxu0
        %v1344 = vadd.f32 %v1308, %v1343
        %v1345 = vpop.f32.mrb[0].mxu0
        %v1346 = vpop.f32.mrb[0].mxu0
        %v1347 = vpop.f32.mrb[0].mxu0
        %1348 = vdwg.mxu0
        %v1349 = vsub.f32 0.0, %v1344
        %v1350 = vmul.f32 %v1349, 1.442695
        %v1351 = vpow.pop %v1350
        %v1352 = vadd.f32 %v1351, 1.0
        %v1353 = vrcp.pop %v1352
        %1354 = vst [vmem:[%s268] sm:$0x1] %v1353
        %p1355 = scmp.lt.s32.totalorder %s21, 2
        %s1356 = scalar_select %p1355, %s21, 2
        %s1357 = scalar_lea.vmem %s5, %s1356
        // Predicated region
        $region49: #{discriminator_forward.1} parent=39 // pred_check
          %p1358 = pneg %p149
        $region50: #{discriminator_forward.1} parent=39 // pred_check_branch
          %1360 = sbr.rel (%p1358) target = $region52
        $region51: #{discriminator_forward.1} parent=39 // pred_region
          _
        $region52: #{discriminator_forward.1} parent=39 // pred_fallthru
          _
      $region40: #{discriminator_forward.1} parent=5 // pred_fallthru
        _
      %p1361 = scmp.le.s32.totalorder 2, %s16
      // Predicated region
      $region53: #{discriminator_forward.1} parent=5 // pred_check
        %p1362 = pneg %p1361
      $region54: #{discriminator_forward.1} parent=5 // pred_check_branch
        %1364 = sbr.rel (%p1362) target = $region56
      $region55: #{discriminator_forward.1} parent=5 // pred_region
        %s1365 = ssub.s32 %s16, 2
        // Predicated region
        $region57: #{discriminator_forward.1} parent=55 // pred_check
          %p1366 = pneg %p155
        $region58: #{discriminator_forward.1} parent=55 // pred_check_branch
          %1368 = sbr.rel (%p1366) target = $region60
        $region59: #{discriminator_forward.1} parent=55 // pred_region
          %p1369 = scmp.lt.s32.totalorder %s22, 2
          %s1370 = scalar_select %p1369, %s22, 2
          %s1371 = scalar_lea.vmem %s5, %s1370
        $region60: #{discriminator_forward.1} parent=55 // pred_fallthru
          _
      $region56: #{discriminator_forward.1} parent=5 // pred_fallthru
        _
    $region6: #{discriminator_forward.1} parent=1 // loop_footer
      %s20 = sadd.s32 1, %s16
    $region7: #{discriminator_forward.1} parent=1 // loop_footer_branch
      %15 = sbr.rel target = $region3
    $region8: #{discriminator_forward.1} parent=1 // loop_exit
      _
    %1372 = vsyncpa [#allocation4], 1
    %s1373 = scalar_lea.sflag [#allocation4], 1
    %1374 = vsyncpa %s1373, 1
    %1375 = vsyncpa [#allocation6], 1

</llo_original>
